<compile_context>
chip_gen: v6e
topology: v6e:2x2x1
jax: 0.10.0
libtpu: 0.0.40
codegen_flags: <defaults>
</compile_context>

<pallas_src>
import jax
import jax.numpy as jnp
from jax import lax
from jax.experimental import pallas as pl
from jax.experimental.pallas import tpu as pltpu


def _round_up(x, m):
    return ((x + m - 1) // m) * m


def _default_vmem_limit():
    """Scoped-VMEM budget derived from physical VMEM (works on v5e/v6e/v7x)."""
    try:
        info = pltpu.get_tpu_info()
        phys = int(getattr(info, "vmem_capacity_bytes", 128 * 1024 * 1024))
    except Exception:
        phys = 128 * 1024 * 1024
    # ~70% of physical: v7x (64 MiB) -> ~45 MiB, v5e/v6e (128 MiB) -> ~90 MiB.
    return max(16 * 1024 * 1024, min(96 * 1024 * 1024, int(phys * 0.7)))


def baseline_loss(probs, targs, lengths, *, binary_targets=False,
                  n_parallel=1, vmem_limit_bytes=None,
                  block_rows=None, lane_block=None):
    """Masked BCE: sum over valid (t < length) positions of
    -(targ*log(p) + (1-targ)*log1p(-p)), divided by the batch size.

    probs, targs: (T, B, D) float (any float dtype; upcast to f32 in-kernel).
    lengths: (B,) int.
    binary_targets=True uses a single log per element; ONLY valid when targets
      are exactly in {0, 1} (soft targets would silently give a different loss).
    n_parallel: number of independent partial sums along the leading grid axis
      (use 2 on 2-TensorCore v7x; keep 1 on single-TC v5e/v6e).
    """
    T, B, D = probs.shape
    BD = B * D
    if vmem_limit_bytes is None:
        vmem_limit_bytes = _default_vmem_limit()

    itemsize = max(jnp.dtype(probs.dtype).itemsize, jnp.dtype(targs.dtype).itemsize)

    # ---- lane (last-dim) layout: pad B*D up to a multiple of 128 ------------
    bd128 = _round_up(BD, 128)
    # Lane-tile width: full padded width unless that would blow the VMEM budget
    # at the minimum 8-row tile (2 inputs x 2 pipeline buffers).
    lane_cap = max(128, (vmem_limit_bytes // (2 * 8 * itemsize * 4)) // 128 * 128)
    tl = bd128 if lane_block is None else max(128, _round_up(lane_block, 128))
    tl = min(tl, bd128, lane_cap)
    BDp = _round_up(bd128, tl)          # padded lane extent (multiple of tl)
    nl = BDp // tl                      # lane tiles

    # ---- time (row) tile: ~1/5 of the VMEM budget per input buffer ----------
    tile_bytes = max(vmem_limit_bytes // 5, 8 * tl * itemsize)
    if block_rows is None:
        tt = max(8, (tile_bytes // (tl * itemsize)) // 8 * 8)
    else:
        tt = max(8, _round_up(block_rows, 8))
    tt = min(tt, _round_up(T, 8))

    nt = pl.cdiv(T, tt)                    # row tiles over the time axis
    n_par = max(1, min(n_parallel, nt))    # independent partial sums
    tpp = pl.cdiv(nt, n_par)               # row tiles per parallel program

    # ---- wrapper-side plumbing: lane-dense 2D views, zero-length pad cols ---
    probs2 = probs.reshape(T, BD)
    targs2 = targs.reshape(T, BD)
    pad = BDp - BD
    if pad:
        probs2 = jnp.pad(probs2, ((0, 0), (0, pad)), constant_values=0.5)
        targs2 = jnp.pad(targs2, ((0, 0), (0, pad)), constant_values=0.0)

    lengths_c = jnp.minimum(lengths.astype(jnp.int32), T)
    lengths_cols = jnp.repeat(lengths_c, D, total_repeat_length=BD)
    if pad:
        lengths_cols = jnp.pad(lengths_cols, (0, pad))   # pad columns -> length 0
    lengths_cols = lengths_cols.reshape(1, BDp)

    # Number of row tiles containing at least one valid row (scalar prefetch).
    # Tiles past this bound are compute-gated and their DMA index is clamped,
    # so the pipeline re-uses the resident block and issues no new copy.
    n_valid_tiles = ((jnp.max(lengths_c) + tt - 1) // tt).astype(jnp.int32).reshape(1)

    def data_map(p, l, j, nv_ref):
        limit = jnp.maximum(jnp.minimum(nv_ref[0], nt) - 1, 0)
        return (jnp.minimum(p * tpp + j, limit), l)

    def len_map(p, l, j, nv_ref):
        return (0, l)

    def out_map(p, l, j, nv_ref):
        return (p, l)

    def kernel(nv_ref, len_ref, p_ref, t_ref, out_ref, acc_ref):
        p_id = pl.program_id(0)
        j = pl.program_id(2)

        @pl.when(j == 0)
        def _init():
            acc_ref[...] = jnp.zeros_like(acc_ref)

        tile_idx = p_id * tpp + j

        # Skip tiles that are entirely past every column's valid length (and
        # over-covered tiles of an uneven parallel split).
        @pl.when(tile_idx < nv_ref[0])
        def _compute():
            probs_t = p_ref[...].astype(jnp.float32)
            targs_t = t_ref[...].astype(jnp.float32)
            if binary_targets:
                # Single transcendental per element; targets must be in {0,1}.
                ll = jnp.log(jnp.where(targs_t > 0.5, probs_t, 1.0 - probs_t))
            else:
                # log1p(-p) + t*(log p - log1p(-p)) == t*log p + (1-t)*log(1-p)
                log_p = jnp.log(probs_t)
                log_1mp = jnp.log1p(-probs_t)
                ll = log_1mp + targs_t * (log_p - log_1mp)

            # Mask rows at/after the per-column length, using indices relative
            # to this tile's first row (no (tt, tl) index-add needed).
            rel_len = len_ref[...] - tile_idx * tt               # (1, tl)
            row_iota = lax.broadcasted_iota(jnp.int32, (tt, tl), 0)
            masked = jnp.where(row_iota < rel_len, ll, 0.0)

            # Whole-vreg VPU accumulation into the (8, tl) accumulator; the
            # 8->1 sublane + cross-lane reduce happens once, in the wrapper.
            if tt == 8:
                acc_ref[...] += masked
            else:
                acc_ref[...] += jnp.sum(masked.reshape(tt // 8, 8, tl), axis=0)

        @pl.when(j == pl.num_programs(2) - 1)
        def _fini():
            out_ref[...] = acc_ref[...]

    n_elem = T * BDp
    cost = pl.CostEstimate(
        flops=8 * n_elem,
        transcendentals=(1 if binary_targets else 2) * n_elem,
        bytes_accessed=2 * n_elem * itemsize + BDp * 4 + n_par * 8 * BDp * 4,
    )

    partials = pl.pallas_call(
        kernel,
        out_shape=jax.ShapeDtypeStruct((n_par * 8, BDp), jnp.float32),
        grid_spec=pltpu.PrefetchScalarGridSpec(
            num_scalar_prefetch=1,
            grid=(n_par, nl, tpp),
            in_specs=[
                pl.BlockSpec((1, tl), len_map),     # per-column lengths (resident)
                pl.BlockSpec((tt, tl), data_map),   # probs tile
                pl.BlockSpec((tt, tl), data_map),   # targs tile
            ],
            out_specs=pl.BlockSpec((8, tl), out_map),
            scratch_shapes=[pltpu.VMEM((8, tl), jnp.float32)],
        ),
        compiler_params=pltpu.CompilerParams(
            dimension_semantics=("parallel", "parallel", "arbitrary"),
            vmem_limit_bytes=int(vmem_limit_bytes),
        ),
        cost_estimate=cost,
    )(n_valid_tiles, lengths_cols, probs2, targs2)

    # Tiny final reduction; the kernel accumulated the un-negated
    # log-likelihood, so negate once here and normalize by the batch size.
    return -jnp.sum(partials) / jnp.float32(B)


def baseline_loss_ref(probs, targs, lengths):
    T, B, D = probs.shape
    loss = -(targs * jnp.log(probs) + (1.0 - targs) * jnp.log(1.0 - probs))
    mask = (jnp.arange(T)[:, None] < lengths[None, :]).astype(loss.dtype)[:, :, None]
    return (loss * mask).sum() / B


if __name__ == "__main__":
    key = jax.random.PRNGKey(0)
    ks = jax.random.split(key, 12)

    # Case 1: shapes implied by the module (seq=8, batch=2, hidden=32).
    # BD = 64 -> exercises the pad-to-128-lanes path.
    T, B, D = 8, 2, 32
    probs = jnp.clip(jax.nn.sigmoid(jax.random.normal(ks[0], (T, B, D), jnp.float32)),
                     1e-4, 1.0 - 1e-4)
    targs = (jax.random.uniform(ks[1], (T, B, D)) > 0.5).astype(jnp.float32)
    lengths = jax.random.randint(ks[2], (B,), 1, T + 1, dtype=jnp.int32)

    out = jax.block_until_ready(baseline_loss(probs, targs, lengths))
    ref = baseline_loss_ref(probs, targs, lengths)
    assert jnp.allclose(out, ref, rtol=2e-5, atol=1e-5), (out, ref)

    # Binary-target fast path (one log per element) on the same inputs.
    out_bin = jax.block_until_ready(
        baseline_loss(probs, targs, lengths, binary_targets=True))
    assert jnp.allclose(out_bin, ref, rtol=2e-5, atol=1e-5), (out_bin, ref)

    # Case 2: multi-tile grid with an odd tile count (nt=3) and a 2-way
    # parallel split -> exercises the clamp + pl.when gating of the duplicate
    # / over-covered tile (v7x-style usage).
    T2, B2, D2 = 20, 4, 32
    probs2 = jnp.clip(jax.nn.sigmoid(jax.random.normal(ks[3], (T2, B2, D2), jnp.float32)),
                      1e-4, 1.0 - 1e-4)
    targs2 = (jax.random.uniform(ks[4], (T2, B2, D2)) > 0.5).astype(jnp.float32)
    lengths2 = jax.random.randint(ks[5], (B2,), 1, T2 + 1, dtype=jnp.int32)

    out2 = jax.block_until_ready(
        baseline_loss(probs2, targs2, lengths2, block_rows=8, n_parallel=2))
    ref2 = baseline_loss_ref(probs2, targs2, lengths2)
    assert jnp.allclose(out2, ref2, rtol=2e-5, atol=1e-5), (out2, ref2)

    # Case 3: non-128-multiple BD (200 -> padded to 256), explicit lane tiling
    # (tl=128 -> 2 lane tiles), tall tile (tt=24 -> folded vreg accumulation),
    # and short ragged lengths.
    T3, B3, D3 = 24, 2, 100
    probs3 = jnp.clip(jax.nn.sigmoid(jax.random.normal(ks[6], (T3, B3, D3), jnp.float32)),
                      1e-4, 1.0 - 1e-4)
    targs3 = (jax.random.uniform(ks[7], (T3, B3, D3)) > 0.5).astype(jnp.float32)
    lengths3 = jax.random.randint(ks[8], (B3,), 1, 9, dtype=jnp.int32)

    out3 = jax.block_until_ready(
        baseline_loss(probs3, targs3, lengths3, lane_block=128))
    ref3 = baseline_loss_ref(probs3, targs3, lengths3)
    assert jnp.allclose(out3, ref3, rtol=2e-5, atol=1e-5), (out3, ref3)

    # Case 4: bfloat16 inputs in HBM (half the bytes; kernel upcasts to f32).
    T4, B4, D4 = 16, 2, 32
    probs4 = jnp.clip(jax.nn.sigmoid(jax.random.normal(ks[9], (T4, B4, D4), jnp.float32)),
                      0.05, 0.95).astype(jnp.bfloat16)
    targs4 = (jax.random.uniform(ks[10], (T4, B4, D4)) > 0.5).astype(jnp.bfloat16)
    lengths4 = jax.random.randint(ks[11], (B4,), 1, T4 + 1, dtype=jnp.int32)

    out4 = jax.block_until_ready(baseline_loss(probs4, targs4, lengths4))
    ref4 = baseline_loss_ref(probs4.astype(jnp.float32),
                             targs4.astype(jnp.float32), lengths4)
    assert jnp.allclose(out4, ref4, rtol=2e-2, atol=1e-3), (out4, ref4)

    print("KERNEL_OK")
</pallas_src>

<mosaic_0001>
module attributes {stable_mosaic.version = 11 : i64} {
  func.func @kernel(%arg0: i32, %arg1: i32, %arg2: i32, %arg3: memref<1xi32, #tpu.memory_space<smem>>, %arg4: memref<1x128xi32, #tpu.memory_space<vmem>>, %arg5: memref<8x128xf32, #tpu.memory_space<vmem>>, %arg6: memref<8x128xf32, #tpu.memory_space<vmem>>, %arg7: memref<8x128xf32, #tpu.memory_space<vmem>>, %arg8: memref<8x128xf32, #tpu.memory_space<vmem>>) attributes {dimension_semantics = [#tpu.dimension_semantics<parallel>, #tpu.dimension_semantics<parallel>, #tpu.dimension_semantics<arbitrary>], iteration_bounds = array<i64: 1, 1, 1>, scalar_prefetch = 1 : i64, scratch_operands = 1 : i64, tpu.core_type = #tpu.core_type<tc>, window_params = [{transform_indices = @transform_0, window_bounds = array<i64: 1, 128>}, {transform_indices = @transform_1, window_bounds = array<i64: 8, 128>}, {transform_indices = @transform_2, window_bounds = array<i64: 8, 128>}, {transform_indices = @transform_3, window_bounds = array<i64: 8, 128>}]} {
    %c0_i32 = arith.constant 0 : i32
    %0 = arith.cmpi eq, %arg2, %c0_i32 : i32
    %1 = arith.extui %0 : i1 to i32
    %c0_i32_0 = arith.constant 0 : i32
    %2 = arith.cmpi ne, %1, %c0_i32_0 : i32
    scf.if %2 {
      %cst = arith.constant 0.000000e+00 : f32
      %12 = vector.broadcast %cst : f32 to vector<8x128xf32>
      %c0_4 = arith.constant 0 : index
      %c0_5 = arith.constant 0 : index
      %13 = vector.load %arg8[%c0_4, %c0_5] : memref<8x128xf32, #tpu.memory_space<vmem>>, vector<8x128xf32>
      tpu.vector_store %arg8[%c0_4, %c0_5], %12 {strides = array<i32>} : memref<8x128xf32, #tpu.memory_space<vmem>>, vector<8x128xf32>,
    } else {
    }
    %c1_i32 = arith.constant 1 : i32
    %3 = arith.muli %arg0, %c1_i32 : i32
    %4 = arith.addi %3, %arg2 : i32
    %c0 = arith.constant 0 : index
    %5 = memref.load %arg3[%c0] : memref<1xi32, #tpu.memory_space<smem>>
    %6 = arith.cmpi slt, %4, %5 : i32
    %7 = arith.extui %6 : i1 to i32
    %c0_i32_1 = arith.constant 0 : i32
    %8 = arith.cmpi ne, %7, %c0_i32_1 : i32
    scf.if %8 {
      %c0_4 = arith.constant 0 : index
      %c0_5 = arith.constant 0 : index
      %12 = vector.load %arg5[%c0_4, %c0_5] : memref<8x128xf32, #tpu.memory_space<vmem>>, vector<8x128xf32>
      %c0_6 = arith.constant 0 : index
      %c0_7 = arith.constant 0 : index
      %13 = vector.load %arg6[%c0_6, %c0_7] : memref<8x128xf32, #tpu.memory_space<vmem>>, vector<8x128xf32>
      %14 = math.log %12 : vector<8x128xf32>
      %cst = arith.constant 0.000000e+00 : f32
      %15 = vector.broadcast %cst : f32 to vector<8x128xf32>
      %16 = arith.subf %15, %12 : vector<8x128xf32>
      %17 = math.log1p %16 : vector<8x128xf32>
      %18 = arith.subf %14, %17 : vector<8x128xf32>
      %19 = arith.mulf %13, %18 : vector<8x128xf32>
      %20 = arith.addf %17, %19 : vector<8x128xf32>
      %c0_8 = arith.constant 0 : index
      %c0_9 = arith.constant 0 : index
      %21 = vector.load %arg4[%c0_8, %c0_9] : memref<1x128xi32, #tpu.memory_space<vmem>>, vector<1x128xi32>
      %c8_i32 = arith.constant 8 : i32
      %22 = arith.muli %4, %c8_i32 : i32
      %23 = vector.broadcast %22 : i32 to vector<1x128xi32>
      %24 = arith.subi %21, %23 : vector<1x128xi32>
      %25 = tpu.iota {dimensions = array<i32: 0>} : vector<8x128xi32>
      %26 = vector.broadcast %24 : vector<1x128xi32> to vector<8x128xi32>
      %27 = arith.cmpi slt, %25, %26 : vector<8x128xi32>
      %cst_10 = arith.constant 0.000000e+00 : f32
      %28 = vector.broadcast %cst_10 : f32 to vector<8x128xf32>
      %29 = arith.select %27, %20, %28 : vector<8x128xi1>, vector<8x128xf32>
      %c0_11 = arith.constant 0 : index
      %c0_12 = arith.constant 0 : index
      %30 = vector.load %arg8[%c0_11, %c0_12] : memref<8x128xf32, #tpu.memory_space<vmem>>, vector<8x128xf32>
      %31 = arith.addf %30, %29 : vector<8x128xf32>
      %c0_13 = arith.constant 0 : index
      %c0_14 = arith.constant 0 : index
      %32 = vector.load %arg8[%c0_13, %c0_14] : memref<8x128xf32, #tpu.memory_space<vmem>>, vector<8x128xf32>
      tpu.vector_store %arg8[%c0_13, %c0_14], %31 {strides = array<i32>} : memref<8x128xf32, #tpu.memory_space<vmem>>, vector<8x128xf32>,
    } else {
    }
    %c0_i32_2 = arith.constant 0 : i32
    %9 = arith.cmpi eq, %arg2, %c0_i32_2 : i32
    %10 = arith.extui %9 : i1 to i32
    %c0_i32_3 = arith.constant 0 : i32
    %11 = arith.cmpi ne, %10, %c0_i32_3 : i32
    scf.if %11 {
      %c0_4 = arith.constant 0 : index
      %c0_5 = arith.constant 0 : index
      %12 = vector.load %arg8[%c0_4, %c0_5] : memref<8x128xf32, #tpu.memory_space<vmem>>, vector<8x128xf32>
      %c0_6 = arith.constant 0 : index
      %c0_7 = arith.constant 0 : index
      %13 = vector.load %arg7[%c0_6, %c0_7] : memref<8x128xf32, #tpu.memory_space<vmem>>, vector<8x128xf32>
      tpu.vector_store %arg7[%c0_6, %c0_7], %12 {strides = array<i32>} : memref<8x128xf32, #tpu.memory_space<vmem>>, vector<8x128xf32>,
    } else {
    }
    return
  }
  func.func @transform_0(%arg0: i32, %arg1: i32, %arg2: i32, %arg3: memref<1xi32, #tpu.memory_space<smem>>) -> (i32, i32) {
    %c0_i32 = arith.constant 0 : i32
    %c0_i32_0 = arith.constant 0 : i32
    return %c0_i32, %arg1 : i32, i32
  }
  func.func @transform_1(%arg0: i32, %arg1: i32, %arg2: i32, %arg3: memref<1xi32, #tpu.memory_space<smem>>) -> (i32, i32) {
    %c0 = arith.constant 0 : index
    %0 = memref.load %arg3[%c0] : memref<1xi32, #tpu.memory_space<smem>>
    %c1_i32 = arith.constant 1 : i32
    %1 = arith.minsi %0, %c1_i32 : i32
    %c1_i32_0 = arith.constant 1 : i32
    %2 = arith.subi %1, %c1_i32_0 : i32
    %c0_i32 = arith.constant 0 : i32
    %3 = arith.maxsi %2, %c0_i32 : i32
    %c1_i32_1 = arith.constant 1 : i32
    %4 = arith.muli %arg0, %c1_i32_1 : i32
    %5 = arith.addi %4, %arg2 : i32
    %6 = arith.minsi %5, %3 : i32
    %c0_i32_2 = arith.constant 0 : i32
    return %6, %arg1 : i32, i32
  }
  func.func @transform_2(%arg0: i32, %arg1: i32, %arg2: i32, %arg3: memref<1xi32, #tpu.memory_space<smem>>) -> (i32, i32) {
    %c0 = arith.constant 0 : index
    %0 = memref.load %arg3[%c0] : memref<1xi32, #tpu.memory_space<smem>>
    %c1_i32 = arith.constant 1 : i32
    %1 = arith.minsi %0, %c1_i32 : i32
    %c1_i32_0 = arith.constant 1 : i32
    %2 = arith.subi %1, %c1_i32_0 : i32
    %c0_i32 = arith.constant 0 : i32
    %3 = arith.maxsi %2, %c0_i32 : i32
    %c1_i32_1 = arith.constant 1 : i32
    %4 = arith.muli %arg0, %c1_i32_1 : i32
    %5 = arith.addi %4, %arg2 : i32
    %6 = arith.minsi %5, %3 : i32
    %c0_i32_2 = arith.constant 0 : i32
    return %6, %arg1 : i32, i32
  }
  func.func @transform_3(%arg0: i32, %arg1: i32, %arg2: i32, %arg3: memref<1xi32, #tpu.memory_space<smem>>) -> (i32, i32) {
    %c0_i32 = arith.constant 0 : i32
    return %arg0, %arg1 : i32, i32
  }
}

</mosaic_0001>

<llo_original>
// kernel: tpu_custom_call.1
$region0: #{tpu_custom_call.1}
  #allocation0 [shape = 'u32[]', space=smem, size = 0x4, offset = 0x4, fixed_abs, tag = 'smem constant byte address 0x4 - core index']
  #allocation1 [shape = 'u32[144,128]{1,0:T(1,128)}', space=vmem, size = 0x12000, scoped, tag = 'internal scratch']
  #allocation2 [shape = 'f32[8,128]{1,0:T(8,128)}', space=vmem, size = 0x1000, scoped, tag = 'scratch operand']
  #allocation3 [shape = 's32[1]{0}', space=sflag, size = 0x4, scoped, tag = 'scoped memory for tpu_custom_call.1']
  #allocation4 [shape = 's32[1]{0:T(128)S(6)}', space=smem, size = 0x200, scoped, tag = 'prefetched SMEM operand 0']
  %s0 = inlined_call_operand.<no memory space> [shape: s32[1], index: 0, kind: input, shape index: {}]
  %s1 = inlined_call_operand.vmem [shape: s32[1,128], index: 1, kind: input, shape index: {}]
  %s2 = inlined_call_operand.hbm [shape: f32[8,128], index: 2, kind: input, shape index: {}]
  %s3 = inlined_call_operand.hbm [shape: f32[8,128], index: 3, kind: input, shape index: {}]
  %s4 = inlined_call_operand.hbm [shape: f32[8,128], index: 4, kind: output, shape index: {}]
  %s5 = sld [smem:[#allocation0]]
  $region42: #{tpu_custom_call.1} parent=0
    _
  %s7 = ssub.s32 1, %s5
  %s8 = scalar_select 0, %s7, %s5
  %9 = sst [smem:[#allocation4]] %s0
  $region1: #{tpu_custom_call.1} parent=0
    #allocation5 [shape = 'u8[4096]{0}', space=vmem, size = 0x1000, scoped, tag = 'input window, operand 2, single buffered']
    #allocation6 [shape = 's32[1]{0}', space=sflag, size = 0x4, scoped, tag = 'scoped memory for tpu_custom_call.1']
    #allocation7 [shape = 's32[1]{0}', space=sflag, size = 0x4, scoped, tag = 'scoped memory for tpu_custom_call.1']
    #allocation8 [shape = 'u8[4096]{0}', space=vmem, size = 0x1000, scoped, tag = 'input window, operand 3, single buffered']
    #allocation9 [shape = 's32[1]{0}', space=sflag, size = 0x4, scoped, tag = 'scoped memory for tpu_custom_call.1']
    #allocation10 [shape = 'u8[4096]{0}', space=vmem, size = 0x1000, scoped, tag = 'output window, operand 0, single buffered']
    %10 = vsyncpa [#allocation6], 0
    %11 = vsyncpa [#allocation9], 0
    %12 = vsyncpa [#allocation7], 0
    // Predicated region
    $region2: #{tpu_custom_call.1} parent=1 // pred_check
      _
    $region3: #{tpu_custom_call.1} parent=1 // pred_check_branch
      %14 = sbr.rel (0) target = $region5
    $region4: #{tpu_custom_call.1} parent=1 // pred_region
      _
    $region5: #{tpu_custom_call.1} parent=1 // pred_fallthru
      _
    // Predicated region
    $region6: #{tpu_custom_call.1} parent=1 // pred_check
      _
    $region7: #{tpu_custom_call.1} parent=1 // pred_check_branch
      %16 = sbr.rel (0) target = $region9
    $region8: #{tpu_custom_call.1} parent=1 // pred_region
      %s17 = sld [smem:[#allocation4]]
      %p18 = scmp.lt.s32.totalorder %s17, 1
      %s19 = scalar_select %p18, %s17, 1
      %s20 = ssub.s32 %s19, 1
      %p21 = scmp.gt.s32.totalorder %s20, 0
      %s22 = scalar_select %p21, %s20, 0
      %s23 = sadd.s32 0, 0
      %p24 = scmp.lt.s32.totalorder %s23, %s22
      %s25 = scalar_select %p24, %s23, %s22
      %s27 = ssub.s32 128, 128
      %28 = vsyncadd [#allocation6], %s27
      %s29 = smul.addr %s25, 128
      %s30 = scalar_lea.hbm %s2, %s29
      %s32 = sshll.u32 [#allocation5], 4
      %s33 = int_to_ptr.vmem [resolvable:$true] %s32
      %35 = dma.hbm_to_vmem [thread:$0]  %s30, 128, %s33, [#allocation6]
    $region9: #{tpu_custom_call.1} parent=1 // pred_fallthru
      _
    // Predicated region
    $region10: #{tpu_custom_call.1} parent=1 // pred_check
      _
    $region11: #{tpu_custom_call.1} parent=1 // pred_check_branch
      %37 = sbr.rel (0) target = $region13
    $region12: #{tpu_custom_call.1} parent=1 // pred_region
      %s38 = sld [smem:[#allocation4]]
      %p39 = scmp.lt.s32.totalorder %s38, 1
      %s40 = scalar_select %p39, %s38, 1
      %s41 = ssub.s32 %s40, 1
      %p42 = scmp.gt.s32.totalorder %s41, 0
      %s43 = scalar_select %p42, %s41, 0
      %s44 = sadd.s32 0, 0
      %p45 = scmp.lt.s32.totalorder %s44, %s43
      %s46 = scalar_select %p45, %s44, %s43
      %s48 = ssub.s32 128, 128
      %49 = vsyncadd [#allocation9], %s48
      %s50 = smul.addr %s46, 128
      %s51 = scalar_lea.hbm %s3, %s50
      %s53 = sshll.u32 [#allocation8], 4
      %s54 = int_to_ptr.vmem [resolvable:$true] %s53
      %56 = dma.hbm_to_vmem [thread:$0]  %s51, 128, %s54, [#allocation9]
    $region13: #{tpu_custom_call.1} parent=1 // pred_fallthru
      _
    // Predicated region
    $region14: #{tpu_custom_call.1} parent=1 // pred_check
      _
    $region15: #{tpu_custom_call.1} parent=1 // pred_check_branch
      %58 = sbr.rel (0) target = $region17
    $region16: #{tpu_custom_call.1} parent=1 // pred_region
      %59 = dma.done [#allocation6], 128
    $region17: #{tpu_custom_call.1} parent=1 // pred_fallthru
      _
    // Predicated region
    $region18: #{tpu_custom_call.1} parent=1 // pred_check
      _
    $region19: #{tpu_custom_call.1} parent=1 // pred_check_branch
      %61 = sbr.rel (0) target = $region21
    $region20: #{tpu_custom_call.1} parent=1 // pred_region
      %62 = dma.done [#allocation9], 128
    $region21: #{tpu_custom_call.1} parent=1 // pred_fallthru
      _
    %s63 = sld [smem:[#allocation4]]
    %p64 = scmp.lt.s32.totalorder %s63, 1
    %s65 = scalar_select %p64, %s63, 1
    %s66 = ssub.s32 %s65, 1
    %p67 = scmp.gt.s32.totalorder %s66, 0
    %s68 = scalar_select %p67, %s66, 0
    %s69 = sadd.s32 0, 0
    %p70 = scmp.lt.s32.totalorder %s69, %s68
    %s71 = scalar_select %p70, %s69, %s68
    %s72 = sld [smem:[#allocation4]]
    %p73 = scmp.lt.s32.totalorder %s72, 1
    %s74 = scalar_select %p73, %s72, 1
    %s75 = ssub.s32 %s74, 1
    %p76 = scmp.gt.s32.totalorder %s75, 0
    %s77 = scalar_select %p76, %s75, 0
    %s78 = sadd.s32 0, 0
    %p79 = scmp.lt.s32.totalorder %s78, %s77
    %s80 = scalar_select %p79, %s78, %s77
    %p81 = scmp.eq.s32.totalorder 0, 0
    // Predicated region
    $region22: #{tpu_custom_call.1} parent=1 // pred_check
      %p82 = pneg %p81
    $region23: #{tpu_custom_call.1} parent=1 // pred_check_branch
      %84 = sbr.rel (%p82) target = $region25
    $region24: #{tpu_custom_call.1} parent=1 // pred_region
      %85 = vst [vmem:[#allocation2] sm:$0xff] 0.0
    $region25: #{tpu_custom_call.1} parent=1 // pred_fallthru
      _
    %s86 = sadd.s32 0, 0
    %s87 = sld [smem:[#allocation4]]
    %p88 = scmp.lt.s32.totalorder %s86, %s87
    // Predicated region
    $region26: #{tpu_custom_call.1} parent=1 // pred_check
      %p89 = pneg %p88
    $region27: #{tpu_custom_call.1} parent=1 // pred_check_branch
      %91 = sbr.rel (%p89) target = $region29
    $region28: #{tpu_custom_call.1} parent=1 // pred_region
      %v92 = vld [vmem:[#allocation5] sm:$0xff]
      %v93 = vld [vmem:[#allocation8] sm:$0xff]
      %v94 = vlog2.pop %v92
      %v95 = vmul.f32 %v94, 0.6931472
      %v96 = vsub.f32 0.0, %v92
      %v97 = vadd.f32 %v96, 1.0
      %v98 = vlog2.pop %v97
      %v99 = vmul.f32 %v98, 0.6931472
      %v100 = vmul.f32 -0.5, %v96
      %v101 = vadd.f32 %v100, 1.0
      %v102 = vmul.f32 %v101, %v96
      %v103 = vand.u32 2147483647, %v96
      %vm104 = vcmp.lt.f32.partialorder %v103, 0.0004427343
      %v105 = vsel %vm104, %v102, %v99
      %v106 = vsub.f32 %v95, %v105
      %v107 = vmul.f32 %v93, %v106
      %v108 = vadd.f32 %v105, %v107
      %v109 = vld [vmem:[%s1] sm:$0x1]
      %s110 = smul.u32 %s86, 8
      %v111 = vstv %s110
      %v112 = vsub.s32 %v109, %v111
      %v113 = vlaneseq
      %v114 = vshrl.u32 %v113, 7
      %v115 = vlaneseq
      %v116 = vshrl.u32 %v115, 7
      %v117 = vsub.s32 0, %v116
      %v118 = vrot.slane %v112, %v117
      %vm119 = vcmp.lt.s32.totalorder %v114, %v118
      %v120 = vsel %vm119, %v108, 0.0
      %v121 = vld [vmem:[#allocation2] sm:$0xff]
      %v122 = vadd.f32 %v121, %v120
      %123 = vst [vmem:[#allocation2] sm:$0xff] %v122
    $region29: #{tpu_custom_call.1} parent=1 // pred_fallthru
      _
    // Predicated region
    $region30: #{tpu_custom_call.1} parent=1 // pred_check
      %p124 = pneg %p81
    $region31: #{tpu_custom_call.1} parent=1 // pred_check_branch
      %126 = sbr.rel (%p124) target = $region33
    $region32: #{tpu_custom_call.1} parent=1 // pred_region
      %v127 = vld [vmem:[#allocation2] sm:$0xff]
      %128 = vst [vmem:[#allocation10] sm:$0xff] %v127
    $region33: #{tpu_custom_call.1} parent=1 // pred_fallthru
      _
    // Predicated region
    $region34: #{tpu_custom_call.1} parent=1 // pred_check
      _
    $region35: #{tpu_custom_call.1} parent=1 // pred_check_branch
      %130 = sbr.rel (0) target = $region37
    $region36: #{tpu_custom_call.1} parent=1 // pred_region
      %s132 = ssub.s32 128, 128
      %133 = vsyncadd [#allocation7], %s132
      %s135 = sshll.u32 [#allocation10], 4
      %s136 = int_to_ptr.vmem [resolvable:$true] %s135
      %138 = dma.vmem_to_hbm [thread:$0]  %s136, 128, %s4, [#allocation7]
    $region37: #{tpu_custom_call.1} parent=1 // pred_fallthru
      _
    // Predicated region
    $region38: #{tpu_custom_call.1} parent=1 // pred_check
      _
    $region39: #{tpu_custom_call.1} parent=1 // pred_check_branch
      %140 = sbr.rel (0) target = $region41
    $region40: #{tpu_custom_call.1} parent=1 // pred_region
      %141 = dma.done [#allocation7], 128
    $region41: #{tpu_custom_call.1} parent=1 // pred_fallthru
      _
    %142 = vsyncpa [#allocation6], 1
    %143 = vsyncpa [#allocation9], 1
    %144 = vsyncpa [#allocation7], 1

</llo_original>
